<compile_context>
chip_gen: v6e
topology: v6e:2x2x1
jax: 0.10.0
libtpu: 0.0.40
codegen_flags: <defaults>
</compile_context>

<pallas_src>
import jax
import jax.numpy as jnp
from jax.experimental import pallas as pl
from jax.experimental.pallas import tpu as pltpu


def _round_up(n, m):
    return ((n + m - 1) // m) * m


def _transition_kernel(x_ref, w1_ref, b1_ref, w2_ref, b2_ref, o_ref):
    # x_ref:  (tm4, pack*C_in)   streamed packed row tile (f32 or bf16)
    # w1_ref: (pack*C_in, pack*C_in)  resident block-diag(W1ᵀ), f32
    # b1_ref: (1, pack*C_in)          resident tiled bias, f32
    # w2_ref: (pack*C_in, pack*C_out) resident block-diag(W2ᵀ), f32
    # b2_ref: (1, pack*C_out)         resident tiled bias, f32
    # o_ref:  (tm4, pack*C_out)  bit-identical row-major layout to (tm, C_out)
    x = x_ref[...]
    h = jnp.dot(x, w1_ref[...], preferred_element_type=jnp.float32)
    h = jnp.maximum(h + b1_ref[...], 0.0)          # bias + ReLU in f32
    y = jnp.dot(h, w2_ref[...], preferred_element_type=jnp.float32)
    o_ref[...] = (y + b2_ref[...]).astype(o_ref.dtype)


def prepare_transition_params(w1, b1, w2, b2):
    """One-time (parameter-load-time) packing of torch-layout Linear params.

    w1: (C_in, C_in), b1: (C_in,), w2: (C_out, C_in), b2: (C_out,)  — torch's
    (out, in) weight layout, i.e. y = x @ W.T + b.
    Returns block-diagonal packed parameters (pack = 128 // C_in rows share
    128 lanes) so the kernel runs fully lane-dense.
    """
    w1 = jnp.asarray(w1, jnp.float32)
    b1 = jnp.asarray(b1, jnp.float32)
    w2 = jnp.asarray(w2, jnp.float32)
    b2 = jnp.asarray(b2, jnp.float32)
    c_in = w1.shape[1]
    c_out = w2.shape[0]
    pack = 128 // c_in if (c_in < 128 and 128 % c_in == 0) else 1
    eye = jnp.eye(pack, dtype=jnp.float32)
    w1_bd = jnp.kron(eye, w1.T)                          # (pack*C_in, pack*C_in)
    w2_bd = jnp.kron(eye, w2.T)                          # (pack*C_in, pack*C_out)
    b1_bd = jnp.tile(b1, pack).reshape(1, pack * c_in)
    b2_bd = jnp.tile(b2, pack).reshape(1, pack * c_out)
    return dict(pack=pack, c_in=c_in, c_out=c_out,
                w1=w1_bd, b1=b1_bd, w2=w2_bd, b2=b2_bd)


def pt_transition(points, params, *, block_m=None, stream_bf16=False,
                  bf16_out=False):
    """points: [B, N, C_in]; params: output of prepare_transition_params.
    Returns [B, N, C_out] (points.dtype, or bf16 if bf16_out)."""
    B, N, c_in = points.shape
    assert c_in == params["c_in"], "channel mismatch with packed params"
    pack = params["pack"]
    c_out = params["c_out"]
    c_in_p = pack * c_in                                  # 128 for C_in=32
    c_out_p = pack * c_out                                # 256 for C_out=64
    out_dtype = jnp.bfloat16 if bf16_out else points.dtype

    M = B * N
    M_p = _round_up(M, pack)                              # pad < pack rows only
    M4 = M_p // pack

    x = points.reshape(M, c_in)
    if stream_bf16:
        # Halve streamed-activation HBM bytes; weights & h stay f32.
        x = x.astype(jnp.bfloat16)
    if M_p != M:
        x = jnp.pad(x, ((0, M_p - M), (0, 0)))            # at most pack-1 rows
    x = x.reshape(M4, c_in_p)                             # free row-major view

    # Row tile (in packed units of `pack` rows).  Big enough to amortize the
    # ~0.35us per-grid-step overhead; small enough that double-buffered x/out
    # tiles + resident weights + f32 intermediates stay well under the 32 MiB
    # scoped-VMEM default on v5e/v6e/v7x.
    if block_m is None:
        block_m = 16384 if stream_bf16 else 8192
    row_align = 16 if stream_bf16 else 8                  # sublane packing
    max_tm4 = max(block_m // pack, row_align)
    max_tm4 = (max_tm4 // row_align) * row_align
    if M4 <= max_tm4:
        tm4 = M4          # single block == full extent (exempt from (8,128))
    else:
        tm4 = max_tm4
    grid = (pl.cdiv(M4, tm4),)                            # partial last block OK

    w1, b1, w2, b2 = params["w1"], params["b1"], params["w2"], params["b2"]

    flops = 2 * M4 * (c_in_p * c_in_p + c_in_p * c_out_p)
    bytes_accessed = (
        M4 * c_in_p * jnp.dtype(x.dtype).itemsize                 # x
        + (c_in_p * c_in_p + c_in_p * c_out_p + c_in_p + c_out_p) * 4  # params
        + M4 * c_out_p * jnp.dtype(out_dtype).itemsize)           # out

    out = pl.pallas_call(
        _transition_kernel,
        out_shape=jax.ShapeDtypeStruct((M4, c_out_p), out_dtype),
        grid=grid,
        in_specs=[
            pl.BlockSpec((tm4, c_in_p), lambda i: (i, 0)),        # streamed rows
            pl.BlockSpec((c_in_p, c_in_p), lambda i: (0, 0)),     # resident
            pl.BlockSpec((1, c_in_p), lambda i: (0, 0)),
            pl.BlockSpec((c_in_p, c_out_p), lambda i: (0, 0)),
            pl.BlockSpec((1, c_out_p), lambda i: (0, 0)),
        ],
        out_specs=pl.BlockSpec((tm4, c_out_p), lambda i: (i, 0)),
        compiler_params=pltpu.CompilerParams(
            dimension_semantics=("parallel",)),
        cost_estimate=pl.CostEstimate(
            flops=flops, transcendentals=0, bytes_accessed=bytes_accessed),
    )(x, w1, b1, w2, b2)

    out = out.reshape(M_p, c_out)                          # free view of (M4, pack*C_out)
    if M_p != M:
        out = out[:M]
    return out.reshape(B, N, c_out)


if __name__ == "__main__":
    # Small deterministic setup: batch=2, points=16, in_channel=32, out_channel=64
    B, N, C_in, C_out = 2, 16, 32, 64
    key = jax.random.PRNGKey(0)
    k_pts, k_w1, k_b1, k_w2, k_b2 = jax.random.split(key, 5)

    points = jax.random.normal(k_pts, (B, N, C_in), dtype=jnp.float32)

    # Synthetic params mirroring nn.Linear shapes (torch layout: W is (out, in)).
    bound1 = 1.0 / jnp.sqrt(C_in)
    w1 = jax.random.uniform(k_w1, (C_in, C_in), minval=-bound1, maxval=bound1)
    b1 = jax.random.uniform(k_b1, (C_in,), minval=-bound1, maxval=bound1)
    w2 = jax.random.uniform(k_w2, (C_out, C_in), minval=-bound1, maxval=bound1)
    b2 = jax.random.uniform(k_b2, (C_out,), minval=-bound1, maxval=bound1)

    # One-time packing at "parameter load" (not per call).
    params = prepare_transition_params(w1, b1, w2, b2)

    # Plain-JAX reference (same math as the PyTorch module).
    ref = jnp.maximum(points @ w1.T + b1, 0.0) @ w2.T + b2

    # 1) f32 path (faithful to the PyTorch module numerics), M % pack == 0.
    out = pt_transition(points, params)
    jax.block_until_ready(out)
    assert out.shape == (B, N, C_out)
    assert jnp.allclose(out, ref, atol=1e-5, rtol=1e-5)

    # 2) bf16-streaming fast path (x streamed in bf16, weights/h stay f32),
    #    plus bf16 output to also halve output HBM bytes.
    out_bf16 = pt_transition(points, params, stream_bf16=True, bf16_out=True)
    jax.block_until_ready(out_bf16)
    assert out_bf16.shape == (B, N, C_out)
    assert jnp.allclose(out_bf16.astype(jnp.float32), ref, atol=5e-2, rtol=5e-2)

    # 3) M not a multiple of the pack factor — exercises the tiny pad + slice.
    B2, N2 = 3, 10                                           # M = 30
    pts2 = jax.random.normal(jax.random.PRNGKey(1), (B2, N2, C_in),
                             dtype=jnp.float32)
    ref2 = jnp.maximum(pts2 @ w1.T + b1, 0.0) @ w2.T + b2
    out2 = pt_transition(pts2, params)
    jax.block_until_ready(out2)
    assert out2.shape == (B2, N2, C_out)
    assert jnp.allclose(out2, ref2, atol=1e-5, rtol=1e-5)

    # 4) Multi-step grid with a partial last block (masked-store path).
    B3, N3 = 2, 100                                          # M = 200 -> M4 = 50
    pts3 = jax.random.normal(jax.random.PRNGKey(2), (B3, N3, C_in),
                             dtype=jnp.float32)
    ref3 = jnp.maximum(pts3 @ w1.T + b1, 0.0) @ w2.T + b2
    out3 = pt_transition(pts3, params, block_m=64)           # tm4=16, grid=4
    jax.block_until_ready(out3)
    assert out3.shape == (B3, N3, C_out)
    assert jnp.allclose(out3, ref3, atol=1e-5, rtol=1e-5)

    print("KERNEL_OK")
</pallas_src>

<mosaic_0001>
module attributes {stable_mosaic.version = 11 : i64} {
  func.func @_transition_kernel(%arg0: i32, %arg1: memref<8x128xf32, #tpu.memory_space<vmem>>, %arg2: memref<128x128xf32, #tpu.memory_space<vmem>>, %arg3: memref<1x128xf32, #tpu.memory_space<vmem>>, %arg4: memref<128x256xf32, #tpu.memory_space<vmem>>, %arg5: memref<1x256xf32, #tpu.memory_space<vmem>>, %arg6: memref<8x256xf32, #tpu.memory_space<vmem>>) attributes {dimension_semantics = [#tpu.dimension_semantics<parallel>], iteration_bounds = array<i64: 1>, scalar_prefetch = 0 : i64, scratch_operands = 0 : i64, tpu.core_type = #tpu.core_type<tc>, window_params = [{transform_indices = @transform_0, window_bounds = array<i64: 8, 128>}, {pipeline_mode = #tpu.pipeline_mode<synchronous>, transform_indices = @transform_1, window_bounds = array<i64: 128, 128>}, {pipeline_mode = #tpu.pipeline_mode<synchronous>, transform_indices = @transform_2, window_bounds = array<i64: 1, 128>}, {pipeline_mode = #tpu.pipeline_mode<synchronous>, transform_indices = @transform_3, window_bounds = array<i64: 128, 256>}, {pipeline_mode = #tpu.pipeline_mode<synchronous>, transform_indices = @transform_4, window_bounds = array<i64: 1, 256>}, {transform_indices = @transform_5, window_bounds = array<i64: 8, 256>}]} {
    %c0 = arith.constant 0 : index
    %c0_0 = arith.constant 0 : index
    %0 = vector.load %arg1[%c0, %c0_0] : memref<8x128xf32, #tpu.memory_space<vmem>>, vector<8x128xf32>
    %c0_1 = arith.constant 0 : index
    %c0_2 = arith.constant 0 : index
    %1 = vector.load %arg2[%c0_1, %c0_2] : memref<128x128xf32, #tpu.memory_space<vmem>>, vector<128x128xf32>
    %cst = arith.constant dense<0.000000e+00> : vector<8x128xf32>
    %2 = tpu.matmul %0, %1, %cst {dimension_numbers = #tpu.dot_dimension_numbers<[1], [0], [0], [1], [0, 0, 1, 1], [], []>} : vector<8x128xf32>, vector<128x128xf32>, vector<8x128xf32> -> vector<8x128xf32>
    %c0_3 = arith.constant 0 : index
    %c0_4 = arith.constant 0 : index
    %3 = vector.load %arg3[%c0_3, %c0_4] : memref<1x128xf32, #tpu.memory_space<vmem>>, vector<1x128xf32>
    %4 = vector.broadcast %3 : vector<1x128xf32> to vector<8x128xf32>
    %5 = arith.addf %2, %4 : vector<8x128xf32>
    %cst_5 = arith.constant 0.000000e+00 : f32
    %6 = vector.broadcast %cst_5 : f32 to vector<8x128xf32>
    %7 = arith.maximumf %5, %6 : vector<8x128xf32>
    %c0_6 = arith.constant 0 : index
    %c0_7 = arith.constant 0 : index
    %8 = vector.load %arg4[%c0_6, %c0_7] : memref<128x256xf32, #tpu.memory_space<vmem>>, vector<128x256xf32>
    %cst_8 = arith.constant dense<0.000000e+00> : vector<8x256xf32>
    %9 = tpu.matmul %7, %8, %cst_8 {dimension_numbers = #tpu.dot_dimension_numbers<[1], [0], [0], [1], [0, 0, 1, 1], [], []>} : vector<8x128xf32>, vector<128x256xf32>, vector<8x256xf32> -> vector<8x256xf32>
    %c0_9 = arith.constant 0 : index
    %c0_10 = arith.constant 0 : index
    %10 = vector.load %arg5[%c0_9, %c0_10] : memref<1x256xf32, #tpu.memory_space<vmem>>, vector<1x256xf32>
    %11 = vector.broadcast %10 : vector<1x256xf32> to vector<8x256xf32>
    %12 = arith.addf %9, %11 : vector<8x256xf32>
    %c0_11 = arith.constant 0 : index
    %c0_12 = arith.constant 0 : index
    %13 = vector.load %arg6[%c0_11, %c0_12] : memref<8x256xf32, #tpu.memory_space<vmem>>, vector<8x256xf32>
    tpu.vector_store %arg6[%c0_11, %c0_12], %12 {strides = array<i32>} : memref<8x256xf32, #tpu.memory_space<vmem>>, vector<8x256xf32>,
    return
  }
  func.func @transform_0(%arg0: i32) -> (i32, i32) {
    %c0_i32 = arith.constant 0 : i32
    %c0_i32_0 = arith.constant 0 : i32
    return %arg0, %c0_i32 : i32, i32
  }
  func.func @transform_1(%arg0: i32) -> (i32, i32) {
    %c0_i32 = arith.constant 0 : i32
    %c0_i32_0 = arith.constant 0 : i32
    %c0_i32_1 = arith.constant 0 : i32
    return %c0_i32, %c0_i32_0 : i32, i32
  }
  func.func @transform_2(%arg0: i32) -> (i32, i32) {
    %c0_i32 = arith.constant 0 : i32
    %c0_i32_0 = arith.constant 0 : i32
    %c0_i32_1 = arith.constant 0 : i32
    return %c0_i32, %c0_i32_0 : i32, i32
  }
  func.func @transform_3(%arg0: i32) -> (i32, i32) {
    %c0_i32 = arith.constant 0 : i32
    %c0_i32_0 = arith.constant 0 : i32
    %c0_i32_1 = arith.constant 0 : i32
    return %c0_i32, %c0_i32_0 : i32, i32
  }
  func.func @transform_4(%arg0: i32) -> (i32, i32) {
    %c0_i32 = arith.constant 0 : i32
    %c0_i32_0 = arith.constant 0 : i32
    %c0_i32_1 = arith.constant 0 : i32
    return %c0_i32, %c0_i32_0 : i32, i32
  }
  func.func @transform_5(%arg0: i32) -> (i32, i32) {
    %c0_i32 = arith.constant 0 : i32
    %c0_i32_0 = arith.constant 0 : i32
    return %arg0, %c0_i32 : i32, i32
  }
}

</mosaic_0001>

<llo_original>
// kernel: tpu_custom_call.1
$region0: #{tpu_custom_call.1}
  #allocation0 [shape = 'u32[]', space=smem, size = 0x4, offset = 0x4, fixed_abs, tag = 'smem constant byte address 0x4 - core index']
  #allocation1 [shape = 'u32[144,128]{1,0:T(1,128)}', space=vmem, size = 0x12000, scoped, tag = 'internal scratch']
  %s0 = inlined_call_operand.hbm [shape: f32[8,128], index: 0, kind: input, shape index: {}]
  %s1 = inlined_call_operand.hbm [shape: f32[128,128], index: 1, kind: input, shape index: {}]
  %s2 = inlined_call_operand.vmem [shape: f32[1,128], index: 2, kind: input, shape index: {}]
  %s3 = inlined_call_operand.hbm [shape: f32[128,256], index: 3, kind: input, shape index: {}]
  %s4 = inlined_call_operand.vmem [shape: f32[1,256], index: 4, kind: input, shape index: {}]
  %s5 = inlined_call_operand.hbm [shape: f32[8,256], index: 5, kind: output, shape index: {}]
  %s6 = sld [smem:[#allocation0]]
  $region42: #{tpu_custom_call.1} parent=0
    _
  %s8 = ssub.s32 1, %s6
  %s9 = scalar_select 0, %s8, %s6
  $region1: #{tpu_custom_call.1} parent=0
    #allocation2 [shape = 'u8[4096]{0}', space=vmem, size = 0x1000, scoped, tag = 'input window, operand 0, single buffered']
    #allocation3 [shape = 's32[1]{0}', space=sflag, size = 0x4, scoped, tag = 'scoped memory for tpu_custom_call.1']
    #allocation4 [shape = 's32[1]{0}', space=sflag, size = 0x4, scoped, tag = 'scoped memory for tpu_custom_call.1']
    #allocation5 [shape = 'u8[65536]{0}', space=vmem, size = 0x10000, scoped, tag = 'input window, operand 1, single buffered']
    #allocation6 [shape = 's32[1]{0}', space=sflag, size = 0x4, scoped, tag = 'scoped memory for tpu_custom_call.1']
    #allocation7 [shape = 'u8[131072]{0}', space=vmem, size = 0x20000, scoped, tag = 'input window, operand 3, single buffered']
    #allocation8 [shape = 'u8[8192]{0}', space=vmem, size = 0x2000, scoped, tag = 'output window, operand 0, single buffered']
    %10 = vsyncpa [#allocation3], 0
    %11 = vsyncpa [#allocation6], 0
    %12 = vsyncpa [#allocation4], 0
    // Predicated region
    $region2: #{tpu_custom_call.1} parent=1 // pred_check
      _
    $region3: #{tpu_custom_call.1} parent=1 // pred_check_branch
      %14 = sbr.rel (0) target = $region5
    $region4: #{tpu_custom_call.1} parent=1 // pred_region
      %s16 = ssub.s32 128, 128
      %17 = vsyncadd [#allocation3], %s16
      %s19 = sshll.u32 [#allocation2], 4
      %s20 = int_to_ptr.vmem [resolvable:$true] %s19
      %22 = dma.hbm_to_vmem [thread:$0]  %s0, 128, %s20, [#allocation3]
    $region5: #{tpu_custom_call.1} parent=1 // pred_fallthru
      _
    // Predicated region
    $region6: #{tpu_custom_call.1} parent=1 // pred_check
      _
    $region7: #{tpu_custom_call.1} parent=1 // pred_check_branch
      %24 = sbr.rel (0) target = $region9
    $region8: #{tpu_custom_call.1} parent=1 // pred_region
      %s26 = ssub.s32 2048, 2048
      %27 = vsyncadd [#allocation6], %s26
      %s28 = sshll.u32 [#allocation5], 4
      %s29 = int_to_ptr.vmem [resolvable:$true] %s28
      %34 = dma.hbm_to_vmem [thread:$0]  %s1, 2048, %s29, [#allocation6], 128, 128, 8
    $region9: #{tpu_custom_call.1} parent=1 // pred_fallthru
      _
    // Predicated region
    $region10: #{tpu_custom_call.1} parent=1 // pred_check
      _
    $region11: #{tpu_custom_call.1} parent=1 // pred_check_branch
      %36 = sbr.rel (0) target = $region13
    $region12: #{tpu_custom_call.1} parent=1 // pred_region
      _
    $region13: #{tpu_custom_call.1} parent=1 // pred_fallthru
      _
    // Predicated region
    $region14: #{tpu_custom_call.1} parent=1 // pred_check
      _
    $region15: #{tpu_custom_call.1} parent=1 // pred_check_branch
      %38 = sbr.rel (0) target = $region17
    $region16: #{tpu_custom_call.1} parent=1 // pred_region
      %s40 = ssub.s32 4096, 4096
      %41 = vsyncadd [#allocation6], %s40
      %s42 = sshll.u32 [#allocation7], 4
      %s43 = int_to_ptr.vmem [resolvable:$true] %s42
      %48 = dma.hbm_to_vmem [thread:$0]  %s3, 4096, %s43, [#allocation6], 256, 256, 16
    $region17: #{tpu_custom_call.1} parent=1 // pred_fallthru
      _
    // Predicated region
    $region18: #{tpu_custom_call.1} parent=1 // pred_check
      _
    $region19: #{tpu_custom_call.1} parent=1 // pred_check_branch
      %50 = sbr.rel (0) target = $region21
    $region20: #{tpu_custom_call.1} parent=1 // pred_region
      _
    $region21: #{tpu_custom_call.1} parent=1 // pred_fallthru
      _
    // Predicated region
    $region22: #{tpu_custom_call.1} parent=1 // pred_check
      _
    $region23: #{tpu_custom_call.1} parent=1 // pred_check_branch
      %52 = sbr.rel (0) target = $region25
    $region24: #{tpu_custom_call.1} parent=1 // pred_region
      %53 = dma.done [#allocation3], 128
    $region25: #{tpu_custom_call.1} parent=1 // pred_fallthru
      _
    // Predicated region
    $region26: #{tpu_custom_call.1} parent=1 // pred_check
      _
    $region27: #{tpu_custom_call.1} parent=1 // pred_check_branch
      %55 = sbr.rel (0) target = $region29
    $region28: #{tpu_custom_call.1} parent=1 // pred_region
      %56 = dma.done [#allocation6], 2048
    $region29: #{tpu_custom_call.1} parent=1 // pred_fallthru
      _
    // Predicated region
    $region30: #{tpu_custom_call.1} parent=1 // pred_check
      _
    $region31: #{tpu_custom_call.1} parent=1 // pred_check_branch
      %58 = sbr.rel (0) target = $region33
    $region32: #{tpu_custom_call.1} parent=1 // pred_region
      %59 = dma.done [#allocation6], 4096
    $region33: #{tpu_custom_call.1} parent=1 // pred_fallthru
      _
    %v60 = vld [vmem:[#allocation2] sm:$0xff]
    %v61 = vld [vmem:[#allocation5] sm:$0xff]
    %v62 = vld [vmem:[#allocation5 + $0x8] sm:$0xff]
    %v63 = vld [vmem:[#allocation5 + $0x10] sm:$0xff]
    %v64 = vld [vmem:[#allocation5 + $0x18] sm:$0xff]
    %v65 = vld [vmem:[#allocation5 + $0x20] sm:$0xff]
    %v66 = vld [vmem:[#allocation5 + $0x28] sm:$0xff]
    %v67 = vld [vmem:[#allocation5 + $0x30] sm:$0xff]
    %v68 = vld [vmem:[#allocation5 + $0x38] sm:$0xff]
    %v69 = vld [vmem:[#allocation5 + $0x40] sm:$0xff]
    %v70 = vld [vmem:[#allocation5 + $0x48] sm:$0xff]
    %v71 = vld [vmem:[#allocation5 + $0x50] sm:$0xff]
    %v72 = vld [vmem:[#allocation5 + $0x58] sm:$0xff]
    %v73 = vld [vmem:[#allocation5 + $0x60] sm:$0xff]
    %v74 = vld [vmem:[#allocation5 + $0x68] sm:$0xff]
    %v75 = vld [vmem:[#allocation5 + $0x70] sm:$0xff]
    %v76 = vld [vmem:[#allocation5 + $0x78] sm:$0xff]
    %v77 = vld [vmem:[%s2] sm:$0x1]
    %v79 = vlaneseq
    %v80 = vshrl.u32 %v79, 7
    %v81 = vsub.s32 0, %v80
    %v82 = vrot.slane %v77, %v81
    %84 = vmatprep.subr.mxu0 0.0
    %85 = vmatpush1.msra.mxu0 %v76
    %86 = vmatprep.subr.mxu0 0.0
    %87 = vmatpush1.msra.mxu0 %v75
    %88 = vmatprep.subr.mxu0 0.0
    %89 = vmatpush1.msra.mxu0 %v74
    %90 = vmatprep.subr.mxu0 0.0
    %91 = vmatpush1.msra.mxu0 %v73
    %92 = vmatprep.subr.mxu0 0.0
    %93 = vmatpush1.msra.mxu0 %v72
    %94 = vmatprep.subr.mxu0 0.0
    %95 = vmatpush1.msra.mxu0 %v71
    %96 = vmatprep.subr.mxu0 0.0
    %97 = vmatpush1.msra.mxu0 %v70
    %98 = vmatprep.subr.mxu0 0.0
    %99 = vmatpush1.msra.mxu0 %v69
    %100 = vmatprep.subr.mxu0 0.0
    %101 = vmatpush1.msra.mxu0 %v68
    %102 = vmatprep.subr.mxu0 0.0
    %103 = vmatpush1.msra.mxu0 %v67
    %104 = vmatprep.subr.mxu0 0.0
    %105 = vmatpush1.msra.mxu0 %v66
    %106 = vmatprep.subr.mxu0 0.0
    %107 = vmatpush1.msra.mxu0 %v65
    %108 = vmatprep.subr.mxu0 0.0
    %109 = vmatpush1.msra.mxu0 %v64
    %110 = vmatprep.subr.mxu0 0.0
    %111 = vmatpush1.msra.mxu0 %v63
    %112 = vmatprep.subr.mxu0 0.0
    %113 = vmatpush1.msra.mxu0 %v62
    %114 = vmatprep.subr.mxu0 0.0
    %115 = vmatpush1.msra.mxu0 %v61
    %116 = vmatprep.subr.mxu0 0.0
    %117 = vmatpush2.msra.mxu0 0.0
    %118 = vmatprep.subr.mxu0 0.0
    %119 = vmatpush2.msra.mxu0 0.0
    %120 = vmatprep.subr.mxu0 0.0
    %121 = vmatpush2.msra.mxu0 0.0
    %122 = vmatprep.subr.mxu0 0.0
    %123 = vmatpush2.msra.mxu0 0.0
    %124 = vmatprep.subr.mxu0 0.0
    %125 = vmatpush2.msra.mxu0 0.0
    %126 = vmatprep.subr.mxu0 0.0
    %127 = vmatpush2.msra.mxu0 0.0
    %128 = vmatprep.subr.mxu0 0.0
    %129 = vmatpush2.msra.mxu0 0.0
    %130 = vmatprep.subr.mxu0 0.0
    %131 = vmatpush2.msra.mxu0 0.0
    %132 = vmatprep.subr.mxu0 0.0
    %133 = vmatpush2.msra.mxu0 0.0
    %134 = vmatprep.subr.mxu0 0.0
    %135 = vmatpush2.msra.mxu0 0.0
    %136 = vmatprep.subr.mxu0 0.0
    %137 = vmatpush2.msra.mxu0 0.0
    %138 = vmatprep.subr.mxu0 0.0
    %139 = vmatpush2.msra.mxu0 0.0
    %140 = vmatprep.subr.mxu0 0.0
    %141 = vmatpush2.msra.mxu0 0.0
    %142 = vmatprep.subr.mxu0 0.0
    %143 = vmatpush2.msra.mxu0 0.0
    %144 = vmatprep.subr.mxu0 0.0
    %145 = vmatpush2.msra.mxu0 0.0
    %146 = vmatprep.subr.mxu0 0.0
    %147 = vmatpush2.msra.mxu0 0.0
    %148 = vmatprep.mubr.f32.mxu0 0.0
    %149 = vmatmul.mubr.f32.gmra.mxu0 %v60
    %v150 = vpop.f32.mrf.mxu0
    %v151 = vadd.f32 %v82, %v150
    %v152 = vpop.f32.mrf.mxu0
    %153 = vdwg.mxu0
    %v154 = vmax.f32 %v151, 0.0
    %v155 = vld [vmem:[#allocation7] sm:$0xff]
    %v156 = vld [vmem:[#allocation7 + $0x8] sm:$0xff]
    %v157 = vld [vmem:[#allocation7 + $0x10] sm:$0xff]
    %v158 = vld [vmem:[#allocation7 + $0x18] sm:$0xff]
    %v159 = vld [vmem:[#allocation7 + $0x20] sm:$0xff]
    %v160 = vld [vmem:[#allocation7 + $0x28] sm:$0xff]
    %v161 = vld [vmem:[#allocation7 + $0x30] sm:$0xff]
    %v162 = vld [vmem:[#allocation7 + $0x38] sm:$0xff]
    %v163 = vld [vmem:[#allocation7 + $0x40] sm:$0xff]
    %v164 = vld [vmem:[#allocation7 + $0x48] sm:$0xff]
    %v165 = vld [vmem:[#allocation7 + $0x50] sm:$0xff]
    %v166 = vld [vmem:[#allocation7 + $0x58] sm:$0xff]
    %v167 = vld [vmem:[#allocation7 + $0x60] sm:$0xff]
    %v168 = vld [vmem:[#allocation7 + $0x68] sm:$0xff]
    %v169 = vld [vmem:[#allocation7 + $0x70] sm:$0xff]
    %v170 = vld [vmem:[#allocation7 + $0x78] sm:$0xff]
    %v171 = vld [vmem:[#allocation7 + $0x80] sm:$0xff]
    %v172 = vld [vmem:[#allocation7 + $0x88] sm:$0xff]
    %v173 = vld [vmem:[#allocation7 + $0x90] sm:$0xff]
    %v174 = vld [vmem:[#allocation7 + $0x98] sm:$0xff]
    %v175 = vld [vmem:[#allocation7 + $0xa0] sm:$0xff]
    %v176 = vld [vmem:[#allocation7 + $0xa8] sm:$0xff]
    %v177 = vld [vmem:[#allocation7 + $0xb0] sm:$0xff]
    %v178 = vld [vmem:[#allocation7 + $0xb8] sm:$0xff]
    %v179 = vld [vmem:[#allocation7 + $0xc0] sm:$0xff]
    %v180 = vld [vmem:[#allocation7 + $0xc8] sm:$0xff]
    %v181 = vld [vmem:[#allocation7 + $0xd0] sm:$0xff]
    %v182 = vld [vmem:[#allocation7 + $0xd8] sm:$0xff]
    %v183 = vld [vmem:[#allocation7 + $0xe0] sm:$0xff]
    %v184 = vld [vmem:[#allocation7 + $0xe8] sm:$0xff]
    %v185 = vld [vmem:[#allocation7 + $0xf0] sm:$0xff]
    %v186 = vld [vmem:[#allocation7 + $0xf8] sm:$0xff]
    %v187 = vld [vmem:[%s4] sm:$0x3]
    %v189 = vlaneseq
    %v190 = vshrl.u32 %v189, 7
    %v191 = vsub.s32 0, %v190
    %v192 = vrot.slane %v187, %v191
    %v193 = vlaneseq
    %v194 = vshrl.u32 %v193, 7
    %v195 = vsub.s32 1, %v194
    %v196 = vrot.slane %v187, %v195
    %199 = vmatprep.subr.mxu0 %v186
    %200 = vmatpush1.msra.mxu0 %v185
    %201 = vmatprep.subr.mxu0 %v184
    %202 = vmatpush1.msra.mxu0 %v183
    %203 = vmatprep.subr.mxu0 %v182
    %204 = vmatpush1.msra.mxu0 %v181
    %205 = vmatprep.subr.mxu0 %v180
    %206 = vmatpush1.msra.mxu0 %v179
    %207 = vmatprep.subr.mxu0 %v178
    %208 = vmatpush1.msra.mxu0 %v177
    %209 = vmatprep.subr.mxu0 %v176
    %210 = vmatpush1.msra.mxu0 %v175
    %211 = vmatprep.subr.mxu0 %v174
    %212 = vmatpush1.msra.mxu0 %v173
    %213 = vmatprep.subr.mxu0 %v172
    %214 = vmatpush1.msra.mxu0 %v171
    %215 = vmatprep.subr.mxu0 %v170
    %216 = vmatpush1.msra.mxu0 %v169
    %217 = vmatprep.subr.mxu0 %v168
    %218 = vmatpush1.msra.mxu0 %v167
    %219 = vmatprep.subr.mxu0 %v166
    %220 = vmatpush1.msra.mxu0 %v165
    %221 = vmatprep.subr.mxu0 %v164
    %222 = vmatpush1.msra.mxu0 %v163
    %223 = vmatprep.subr.mxu0 %v162
    %224 = vmatpush1.msra.mxu0 %v161
    %225 = vmatprep.subr.mxu0 %v160
    %226 = vmatpush1.msra.mxu0 %v159
    %227 = vmatprep.subr.mxu0 %v158
    %228 = vmatpush1.msra.mxu0 %v157
    %229 = vmatprep.subr.mxu0 %v156
    %230 = vmatpush1.msra.mxu0 %v155
    %231 = vmatprep.subr.mxu0 0.0
    %232 = vmatpush2.msra.mxu0 0.0
    %233 = vmatprep.subr.mxu0 0.0
    %234 = vmatpush2.msra.mxu0 0.0
    %235 = vmatprep.subr.mxu0 0.0
    %236 = vmatpush2.msra.mxu0 0.0
    %237 = vmatprep.subr.mxu0 0.0
    %238 = vmatpush2.msra.mxu0 0.0
    %239 = vmatprep.subr.mxu0 0.0
    %240 = vmatpush2.msra.mxu0 0.0
    %241 = vmatprep.subr.mxu0 0.0
    %242 = vmatpush2.msra.mxu0 0.0
    %243 = vmatprep.subr.mxu0 0.0
    %244 = vmatpush2.msra.mxu0 0.0
    %245 = vmatprep.subr.mxu0 0.0
    %246 = vmatpush2.msra.mxu0 0.0
    %247 = vmatprep.subr.mxu0 0.0
    %248 = vmatpush2.msra.mxu0 0.0
    %249 = vmatprep.subr.mxu0 0.0
    %250 = vmatpush2.msra.mxu0 0.0
    %251 = vmatprep.subr.mxu0 0.0
    %252 = vmatpush2.msra.mxu0 0.0
    %253 = vmatprep.subr.mxu0 0.0
    %254 = vmatpush2.msra.mxu0 0.0
    %255 = vmatprep.subr.mxu0 0.0
    %256 = vmatpush2.msra.mxu0 0.0
    %257 = vmatprep.subr.mxu0 0.0
    %258 = vmatpush2.msra.mxu0 0.0
    %259 = vmatprep.subr.mxu0 0.0
    %260 = vmatpush2.msra.mxu0 0.0
    %261 = vmatprep.subr.mxu0 0.0
    %262 = vmatpush2.msra.mxu0 0.0
    %263 = vmatprep.mubr.f32.mxu0 0.0
    %264 = vmatmul.mubr.f32.gmra.mxu0 %v154
    %v265 = vpop.f32.mrf.mxu0
    %v266 = vadd.f32 %v192, %v265
    %v267 = vpop.f32.mrf.mxu0
    %v268 = vadd.f32 %v196, %v267
    %269 = vdwg.mxu0
    %270 = vst [vmem:[#allocation8] sm:$0xff] %v266
    %271 = vst [vmem:[#allocation8 + $0x8] sm:$0xff] %v268
    // Predicated region
    $region34: #{tpu_custom_call.1} parent=1 // pred_check
      _
    $region35: #{tpu_custom_call.1} parent=1 // pred_check_branch
      %273 = sbr.rel (0) target = $region37
    $region36: #{tpu_custom_call.1} parent=1 // pred_region
      %s275 = ssub.s32 256, 256
      %276 = vsyncadd [#allocation4], %s275
      %s278 = sshll.u32 [#allocation8], 4
      %s279 = int_to_ptr.vmem [resolvable:$true] %s278
      %281 = dma.vmem_to_hbm [thread:$0]  %s279, 256, %s5, [#allocation4]
    $region37: #{tpu_custom_call.1} parent=1 // pred_fallthru
      _
    // Predicated region
    $region38: #{tpu_custom_call.1} parent=1 // pred_check
      _
    $region39: #{tpu_custom_call.1} parent=1 // pred_check_branch
      %283 = sbr.rel (0) target = $region41
    $region40: #{tpu_custom_call.1} parent=1 // pred_region
      %284 = dma.done [#allocation4], 256
    $region41: #{tpu_custom_call.1} parent=1 // pred_fallthru
      _
    %285 = vsyncpa [#allocation3], 1
    %286 = vsyncpa [#allocation6], 1
    %287 = vsyncpa [#allocation4], 1

</llo_original>
